<compile_context>
chip_gen: v5e
topology: v5e:2x2
jax: 0.10.0
libtpu: 0.0.40
codegen_flags: <defaults>
</compile_context>

<pallas_src>
import numpy as np
import jax
import jax.numpy as jnp
from jax.experimental import pallas as pl
from jax.experimental.pallas import tpu as pltpu

POOLED = 4  # _pooled_image_size


def _round_up(a: int, m: int) -> int:
    return ((a + m - 1) // m) * m


def _adaptive_pool_1d_matrix(in_size: int, out_size: int) -> np.ndarray:
    """(in_size, out_size) matrix replicating nn.AdaptiveAvgPool along one axis."""
    m = np.zeros((in_size, out_size), dtype=np.float32)
    for o in range(out_size):
        start = (o * in_size) // out_size
        end = -((-(o + 1) * in_size) // out_size)  # ceil((o+1)*in/out)
        m[start:end, o] = 1.0 / float(end - start)
    return m


def build_pool_matrix(H: int, W: int) -> jnp.ndarray:
    """(H*W, 16) matrix: (B*C, H*W) @ M == adaptive-avg-pooled rows (per channel)."""
    ph = _adaptive_pool_1d_matrix(H, POOLED)          # (H, 4)
    pw = _adaptive_pool_1d_matrix(W, POOLED)          # (W, 4)
    p2 = np.einsum("hp,wq->hwpq", ph, pw).reshape(H * W, POOLED * POOLED)
    return jnp.asarray(p2, dtype=jnp.float32)


# ---------------------------------------------------------------------------
# Kernel 1: adaptive average pooling as a small row-tiled matmul.
# ---------------------------------------------------------------------------
def pool_kernel(x_ref, pmat_ref, o_ref):
    o_ref[...] = jnp.dot(x_ref[...], pmat_ref[...],
                         preferred_element_type=jnp.float32).astype(o_ref.dtype)


def adaptive_pool(x: jnp.ndarray, pool_mat: jnp.ndarray) -> jnp.ndarray:
    """x: (B, C, H, W) f32 -> (B, C*16) bf16 (matmul operand downstream)."""
    B, C, H, W = x.shape
    rows, hw = B * C, H * W
    tr = min(_round_up(rows, 16), 256)            # 16-sublane safe for bf16 out
    rows_p = _round_up(rows, tr)
    x_bc = jnp.pad(x.reshape(rows, hw).astype(jnp.float32),
                   ((0, rows_p - rows), (0, 0)))

    out = pl.pallas_call(
        pool_kernel,
        out_shape=jax.ShapeDtypeStruct((rows_p, POOLED * POOLED), jnp.bfloat16),
        grid=(rows_p // tr,),
        in_specs=[pl.BlockSpec((tr, hw), lambda i: (i, 0)),
                  pl.BlockSpec((hw, POOLED * POOLED), lambda i: (0, 0))],
        out_specs=pl.BlockSpec((tr, POOLED * POOLED), lambda i: (i, 0)),
        compiler_params=pltpu.CompilerParams(
            dimension_semantics=("parallel",)),
    )(x_bc, pool_mat)
    return out[:rows].reshape(B, C * POOLED * POOLED)


# ---------------------------------------------------------------------------
# Kernel 2: fused FC1 (tiled reduction) + FC2 + fused MDN heads.
# ---------------------------------------------------------------------------
def make_mdn_kernel(K: int):
    def mdn_kernel(xp_ref, w1_ref, b1_ref, w2_ref, b2_ref, wh_ref, bh_ref,
                   out_ref, acc_ref):
        k = pl.program_id(1)

        @pl.when(k == 0)
        def _():
            acc_ref[...] = jnp.zeros_like(acc_ref)

        # FC1 partial product: bf16 operands, f32 accumulation on the MXU.
        acc_ref[...] += jnp.dot(xp_ref[...], w1_ref[...],
                                preferred_element_type=jnp.float32)

        @pl.when(k == pl.num_programs(1) - 1)
        def _():
            h1 = acc_ref[...] + b1_ref[...]                       # (tm, 2048) f32
            h2 = jnp.dot(h1.astype(jnp.bfloat16), w2_ref[...],
                         preferred_element_type=jnp.float32) + b2_ref[...]
            # One fused matmul for [pi | mean | sigma] logits.
            logits = jnp.dot(h2.astype(jnp.bfloat16), wh_ref[...],
                             preferred_element_type=jnp.float32) + bh_ref[...]

            pi_logits = logits[:, 0:K]
            m = jnp.max(pi_logits, axis=1, keepdims=True)
            e = jnp.exp(pi_logits - m)
            pi = e * pl.reciprocal(jnp.sum(e, axis=1, keepdims=True),
                                   approx=True)
            mu = logits[:, K:2 * K]
            sigma = jnp.exp(logits[:, 2 * K:3 * K])
            # join_mdn_output -> concat([pi, mean, sigma], dim=1); single store.
            out_ref[...] = jnp.concatenate([pi, mu, sigma], axis=1)

    return mdn_kernel


def _choose_red_tile(d_in: int) -> int:
    for t in (512, 256, 128):
        if d_in % t == 0:
            return t
    return d_in  # small d_in: single reduction step


def ilmdn_bottleneck_head(x: jnp.ndarray, params: dict,
                          mixture_components: int) -> jnp.ndarray:
    """x: (B, C, H, W) float32 NCHW. Returns (B, 3*K): [pi | mean | sigma]."""
    B, C, H, W = x.shape
    K = mixture_components
    d_in = C * POOLED * POOLED

    pool_mat = build_pool_matrix(H, W)
    pooled = adaptive_pool(x, pool_mat)                     # (B, d_in) bf16

    # Dropout(p=0.2) is identity at inference time.

    # bf16 matmul operands; f32 biases.
    w1 = params["w1"].astype(jnp.bfloat16)                  # (d_in, 2048)
    w2 = params["w2"].astype(jnp.bfloat16)                  # (2048, 512)
    wh = jnp.concatenate([params["wpi"], params["wmu"], params["wsig"]],
                         axis=1).astype(jnp.bfloat16)       # (512, 3K)
    b1 = params["b1"].astype(jnp.float32)
    b2 = params["b2"].astype(jnp.float32)
    bh = jnp.concatenate([params["bpi"], params["bmu"], params["bsig"]],
                         axis=1).astype(jnp.float32)        # (1, 3K)

    tm = min(_round_up(B, 16), 128)                         # pad batch sublanes
    Bp = _round_up(B, tm)
    tk = _choose_red_tile(d_in)
    nm, nk = Bp // tm, d_in // tk

    pooled_p = jnp.pad(pooled, ((0, Bp - B), (0, 0)))

    out = pl.pallas_call(
        make_mdn_kernel(K),
        out_shape=jax.ShapeDtypeStruct((Bp, 3 * K), jnp.float32),
        grid_spec=pltpu.PrefetchScalarGridSpec(
            num_scalar_prefetch=0,
            grid=(nm, nk),
            in_specs=[
                pl.BlockSpec((tm, tk), lambda i, k: (i, k)),        # pooled
                pl.BlockSpec((tk, 2048), lambda i, k: (k, 0)),      # w1
                pl.BlockSpec((1, 2048), lambda i, k: (0, 0)),       # b1
                pl.BlockSpec((2048, 512), lambda i, k: (0, 0)),     # w2
                pl.BlockSpec((1, 512), lambda i, k: (0, 0)),        # b2
                pl.BlockSpec((512, 3 * K), lambda i, k: (0, 0)),    # wh (fused)
                pl.BlockSpec((1, 3 * K), lambda i, k: (0, 0)),      # bh (fused)
            ],
            out_specs=pl.BlockSpec((tm, 3 * K), lambda i, k: (i, 0)),
            scratch_shapes=[pltpu.VMEM((tm, 2048), jnp.float32)],
        ),
        compiler_params=pltpu.CompilerParams(
            dimension_semantics=("parallel", "arbitrary"),
            vmem_limit_bytes=48 << 20),
    )(pooled_p, w1, b1, w2, b2, wh, bh)

    return out[:B]


# ---------------------------------------------------------------------------
# Params + pure-JAX reference.
# ---------------------------------------------------------------------------
def init_params(key, in_channels: int, mixture_components: int):
    d_in = in_channels * POOLED * POOLED
    ks = jax.random.split(key, 10)

    def lin(kw, kb, fan_in, fan_out):
        bound = 1.0 / np.sqrt(fan_in)
        w = jax.random.uniform(kw, (fan_in, fan_out), jnp.float32, -bound, bound)
        b = jax.random.uniform(kb, (1, fan_out), jnp.float32, -bound, bound)
        return w, b

    w1, b1 = lin(ks[0], ks[1], d_in, 2048)
    w2, b2 = lin(ks[2], ks[3], 2048, 512)
    wpi, bpi = lin(ks[4], ks[5], 512, mixture_components)
    wmu, bmu = lin(ks[6], ks[7], 512, mixture_components)
    wsig, bsig = lin(ks[8], ks[9], 512, mixture_components)
    return dict(w1=w1, b1=b1, w2=w2, b2=b2, wpi=wpi, bpi=bpi,
                wmu=wmu, bmu=bmu, wsig=wsig, bsig=bsig)


def reference_forward(x, params, mixture_components):
    """Pure-JAX reference (f32 activations; weights rounded to bf16 to mirror
    the kernel's matmul-operand precision)."""
    B, C, H, W = x.shape
    K = mixture_components

    def bf(w):
        return w.astype(jnp.bfloat16).astype(jnp.float32)

    def mm(a, b):
        return jnp.dot(a, b, precision=jax.lax.Precision.HIGHEST)

    pool_mat = build_pool_matrix(H, W)
    pooled = mm(x.reshape(B * C, H * W), pool_mat).reshape(B, C * 16)
    h1 = mm(pooled, bf(params["w1"])) + params["b1"]
    h2 = mm(h1, bf(params["w2"])) + params["b2"]
    pi = jax.nn.softmax(mm(h2, bf(params["wpi"])) + params["bpi"], axis=1)
    mu = mm(h2, bf(params["wmu"])) + params["bmu"]
    sigma = jnp.exp(mm(h2, bf(params["wsig"])) + params["bsig"])
    return jnp.concatenate([pi, mu, sigma], axis=1)


if __name__ == "__main__":
    B, C, H, W = 2, 4, 16, 16
    K = 5  # mixture_components

    key = jax.random.PRNGKey(0)
    kx, kp = jax.random.split(key)
    x = jax.random.normal(kx, (B, C, H, W), dtype=jnp.float32)
    params = init_params(kp, in_channels=C, mixture_components=K)

    out = ilmdn_bottleneck_head(x, params, mixture_components=K)
    out = jax.block_until_ready(out)

    ref = reference_forward(x, params, K)
    assert out.shape == (B, 3 * K), out.shape
    np.testing.assert_allclose(np.asarray(out), np.asarray(ref),
                               rtol=1e-2, atol=1e-2)
    print("KERNEL_OK")
</pallas_src>

<mosaic_0001>
module attributes {stable_mosaic.version = 11 : i64} {
  func.func @pool_kernel(%arg0: i32, %arg1: memref<16x256xf32, #tpu.memory_space<vmem>>, %arg2: memref<256x16xf32, #tpu.memory_space<vmem>>, %arg3: memref<16x16xbf16, #tpu.memory_space<vmem>>) attributes {dimension_semantics = [#tpu.dimension_semantics<parallel>], iteration_bounds = array<i64: 1>, scalar_prefetch = 0 : i64, scratch_operands = 0 : i64, tpu.core_type = #tpu.core_type<tc>, window_params = [{transform_indices = @transform_0, window_bounds = array<i64: 16, 256>}, {pipeline_mode = #tpu.pipeline_mode<synchronous>, transform_indices = @transform_1, window_bounds = array<i64: 256, 16>}, {transform_indices = @transform_2, window_bounds = array<i64: 16, 16>}]} {
    %c0 = arith.constant 0 : index
    %c0_0 = arith.constant 0 : index
    %0 = vector.load %arg1[%c0, %c0_0] : memref<16x256xf32, #tpu.memory_space<vmem>>, vector<16x256xf32>
    %c0_1 = arith.constant 0 : index
    %c0_2 = arith.constant 0 : index
    %1 = vector.load %arg2[%c0_1, %c0_2] : memref<256x16xf32, #tpu.memory_space<vmem>>, vector<256x16xf32>
    %cst = arith.constant dense<0.000000e+00> : vector<16x16xf32>
    %2 = tpu.matmul %0, %1, %cst {dimension_numbers = #tpu.dot_dimension_numbers<[1], [0], [0], [1], [0, 0, 1, 1], [], []>} : vector<16x256xf32>, vector<256x16xf32>, vector<16x16xf32> -> vector<16x16xf32>
    %3 = arith.truncf %2 : vector<16x16xf32> to vector<16x16xbf16>
    %c0_3 = arith.constant 0 : index
    %c0_4 = arith.constant 0 : index
    %4 = vector.load %arg3[%c0_3, %c0_4] : memref<16x16xbf16, #tpu.memory_space<vmem>>, vector<16x16xbf16>
    tpu.vector_store %arg3[%c0_3, %c0_4], %3 {strides = array<i32>} : memref<16x16xbf16, #tpu.memory_space<vmem>>, vector<16x16xbf16>,
    return
  }
  func.func @transform_0(%arg0: i32) -> (i32, i32) {
    %c0_i32 = arith.constant 0 : i32
    %c0_i32_0 = arith.constant 0 : i32
    return %arg0, %c0_i32 : i32, i32
  }
  func.func @transform_1(%arg0: i32) -> (i32, i32) {
    %c0_i32 = arith.constant 0 : i32
    %c0_i32_0 = arith.constant 0 : i32
    %c0_i32_1 = arith.constant 0 : i32
    return %c0_i32, %c0_i32_0 : i32, i32
  }
  func.func @transform_2(%arg0: i32) -> (i32, i32) {
    %c0_i32 = arith.constant 0 : i32
    %c0_i32_0 = arith.constant 0 : i32
    return %arg0, %c0_i32 : i32, i32
  }
}

</mosaic_0001>

<llo_original>
// kernel: tpu_custom_call.1
$region0: #{tpu_custom_call.1}
  #allocation0 [shape = 'u32[]', space=smem, size = 0x4, offset = 0x4, fixed_abs, tag = 'smem constant byte address 0x4 - core index']
  #allocation1 [shape = 'u32[72,128]{1,0:T(1,128)}', space=vmem, size = 0x9000, scoped, tag = 'internal scratch']
  %s0 = inlined_call_operand.vmem [shape: f32[16,256], index: 0, kind: input, shape index: {}]
  %s1 = inlined_call_operand.vmem [shape: f32[256,16], index: 1, kind: input, shape index: {}]
  %s2 = inlined_call_operand.hbm [shape: bf16[16,16], index: 2, kind: output, shape index: {}]
  %s3 = sld [smem:[#allocation0]]
  $region18: #{tpu_custom_call.1} parent=0
    _
  %s5 = ssub.s32 1, %s3
  %s6 = scalar_select 0, %s5, %s3
  $region1: #{tpu_custom_call.1} parent=0
    #allocation2 [shape = 'u8[4096]{0}', space=vmem, size = 0x1000, scoped, tag = 'output window, operand 0, single buffered']
    #allocation3 [shape = 's32[1]{0}', space=sflag, size = 0x4, scoped, tag = 'scoped memory for tpu_custom_call.1']
    %7 = vsyncpa [#allocation3], 0
    // Predicated region
    $region2: #{tpu_custom_call.1} parent=1 // pred_check
      _
    $region3: #{tpu_custom_call.1} parent=1 // pred_check_branch
      %9 = sbr.rel (0) target = $region5
    $region4: #{tpu_custom_call.1} parent=1 // pred_region
      _
    $region5: #{tpu_custom_call.1} parent=1 // pred_fallthru
      _
    // Predicated region
    $region6: #{tpu_custom_call.1} parent=1 // pred_check
      _
    $region7: #{tpu_custom_call.1} parent=1 // pred_check_branch
      %11 = sbr.rel (0) target = $region9
    $region8: #{tpu_custom_call.1} parent=1 // pred_region
      _
    $region9: #{tpu_custom_call.1} parent=1 // pred_fallthru
      _
    %v12 = vld [vmem:[%s0] sm:$0xff]
    %v13 = vld [vmem:[%s0 + $0x8] sm:$0xff]
    %v14 = vld [vmem:[%s0 + $0x10] sm:$0xff]
    %v15 = vld [vmem:[%s0 + $0x18] sm:$0xff]
    %v16 = vld [vmem:[%s1] sm:$0xff]
    %v17 = vld [vmem:[%s1 + $0x8] sm:$0xff]
    %v18 = vld [vmem:[%s1 + $0x10] sm:$0xff]
    %v19 = vld [vmem:[%s1 + $0x18] sm:$0xff]
    %v20 = vld [vmem:[%s1 + $0x20] sm:$0xff]
    %v21 = vld [vmem:[%s1 + $0x28] sm:$0xff]
    %v22 = vld [vmem:[%s1 + $0x30] sm:$0xff]
    %v23 = vld [vmem:[%s1 + $0x38] sm:$0xff]
    %v24 = vld [vmem:[%s1 + $0x40] sm:$0xff]
    %v25 = vld [vmem:[%s1 + $0x48] sm:$0xff]
    %v26 = vld [vmem:[%s1 + $0x50] sm:$0xff]
    %v27 = vld [vmem:[%s1 + $0x58] sm:$0xff]
    %v28 = vld [vmem:[%s1 + $0x60] sm:$0xff]
    %v29 = vld [vmem:[%s1 + $0x68] sm:$0xff]
    %v30 = vld [vmem:[%s1 + $0x70] sm:$0xff]
    %v31 = vld [vmem:[%s1 + $0x78] sm:$0xff]
    %v32 = vld [vmem:[%s1 + $0x80] sm:$0xff]
    %v33 = vld [vmem:[%s1 + $0x88] sm:$0xff]
    %v34 = vld [vmem:[%s1 + $0x90] sm:$0xff]
    %v35 = vld [vmem:[%s1 + $0x98] sm:$0xff]
    %v36 = vld [vmem:[%s1 + $0xa0] sm:$0xff]
    %v37 = vld [vmem:[%s1 + $0xa8] sm:$0xff]
    %v38 = vld [vmem:[%s1 + $0xb0] sm:$0xff]
    %v39 = vld [vmem:[%s1 + $0xb8] sm:$0xff]
    %v40 = vld [vmem:[%s1 + $0xc0] sm:$0xff]
    %v41 = vld [vmem:[%s1 + $0xc8] sm:$0xff]
    %v42 = vld [vmem:[%s1 + $0xd0] sm:$0xff]
    %v43 = vld [vmem:[%s1 + $0xd8] sm:$0xff]
    %v44 = vld [vmem:[%s1 + $0xe0] sm:$0xff]
    %v45 = vld [vmem:[%s1 + $0xe8] sm:$0xff]
    %v46 = vld [vmem:[%s1 + $0xf0] sm:$0xff]
    %v47 = vld [vmem:[%s1 + $0xf8] sm:$0xff]
    %48 = vmatpush.msra.mxu0 %v31
    %49 = vmatpush.msra.mxu0 %v30
    %50 = vmatpush.msra.mxu0 %v29
    %51 = vmatpush.msra.mxu0 %v28
    %52 = vmatpush.msra.mxu0 %v27
    %53 = vmatpush.msra.mxu0 %v26
    %54 = vmatpush.msra.mxu0 %v25
    %55 = vmatpush.msra.mxu0 %v24
    %56 = vmatpush.msra.mxu0 %v23
    %57 = vmatpush.msra.mxu0 %v22
    %58 = vmatpush.msra.mxu0 %v21
    %59 = vmatpush.msra.mxu0 %v20
    %60 = vmatpush.msra.mxu0 %v19
    %61 = vmatpush.msra.mxu0 %v18
    %62 = vmatpush.msra.mxu0 %v17
    %63 = vmatpush.msra.mxu0 %v16
    %64 = vmatmul.f32.gmra.mxu0 %v12
    %v65 = vpop.f32.mrf.mxu0
    %v66 = vadd.f32 0.0, %v65
    %67 = vmatmul.f32.gmra.mxu0 %v14
    %v68 = vpop.f32.mrf.mxu0
    %v69 = vadd.f32 0.0, %v68
    %70 = vdwg.mxu0
    %71 = vmatpush.msra.mxu0 %v47
    %72 = vmatpush.msra.mxu0 %v46
    %73 = vmatpush.msra.mxu0 %v45
    %74 = vmatpush.msra.mxu0 %v44
    %75 = vmatpush.msra.mxu0 %v43
    %76 = vmatpush.msra.mxu0 %v42
    %77 = vmatpush.msra.mxu0 %v41
    %78 = vmatpush.msra.mxu0 %v40
    %79 = vmatpush.msra.mxu0 %v39
    %80 = vmatpush.msra.mxu0 %v38
    %81 = vmatpush.msra.mxu0 %v37
    %82 = vmatpush.msra.mxu0 %v36
    %83 = vmatpush.msra.mxu0 %v35
    %84 = vmatpush.msra.mxu0 %v34
    %85 = vmatpush.msra.mxu0 %v33
    %86 = vmatpush.msra.mxu0 %v32
    %87 = vmatmul.f32.gmra.mxu0 %v13
    %v88 = vpop.f32.mrf.mxu0
    %v89 = vadd.f32 %v66, %v88
    %90 = vmatmul.f32.gmra.mxu0 %v15
    %v91 = vpop.f32.mrf.mxu0
    %v92 = vadd.f32 %v69, %v91
    %93 = vdwg.mxu0
    %v94 = vpack.c.bf16 %v89, %v89
    %v95 = vpack.c.bf16 %v92, %v92
    %vm96 = vcmask 125952
    %97 = vst.msk [vmem:[#allocation2] sm:$0xf] %vm96, %v94
    %98 = vst.msk [vmem:[#allocation2 + $0x4] sm:$0xf] %vm96, %v95
    // Predicated region
    $region10: #{tpu_custom_call.1} parent=1 // pred_check
      _
    $region11: #{tpu_custom_call.1} parent=1 // pred_check_branch
      %100 = sbr.rel (0) target = $region13
    $region12: #{tpu_custom_call.1} parent=1 // pred_region
      %102 = vsyncadd [#allocation3], 0
      %s103 = sshll.u32 [#allocation2], 4
      %s104 = int_to_ptr.vmem [resolvable:$true] %s103
      %s105 = sshll.u32 %s2, 4
      %s106 = int_to_ptr.hbm [resolvable:$true] %s105
      %111 = dma.vmem_to_hbm [thread:$0]  %s104, 128, %s106, [#allocation3], 64, 64, 4
    $region13: #{tpu_custom_call.1} parent=1 // pred_fallthru
      _
    // Predicated region
    $region14: #{tpu_custom_call.1} parent=1 // pred_check
      _
    $region15: #{tpu_custom_call.1} parent=1 // pred_check_branch
      %113 = sbr.rel (0) target = $region17
    $region16: #{tpu_custom_call.1} parent=1 // pred_region
      %115 = dma.done [#allocation3], 128
    $region17: #{tpu_custom_call.1} parent=1 // pred_fallthru
      _
    %116 = vsyncpa [#allocation3], 1

</llo_original>
